<compile_context>
chip_gen: v7x
topology: tpu7x:2x2x1
jax: 0.10.0
libtpu: 0.0.40
codegen_flags: <defaults>
</compile_context>

<pallas_src>
import functools
import math

import jax
import jax.numpy as jnp
from jax.experimental import pallas as pl
from jax.experimental.pallas import tpu as pltpu


# ----------------------------------------------------------------------------
# Fused kernel: one batch tile per grid step.
#   xw_t = [x_{t-1}, x_t, x_{t+1}, xmark_t] @ W_comb + posb_t     (hoisted, 1 matmul)
#   h_t  = tanh(h_{t-1} @ W_hh^T + xw_t),   h_0 = 0               (batched recurrence)
#   y_k  = h_{L-P+k} @ W_proj^T + b_proj                          (last P steps only)
# ----------------------------------------------------------------------------
def fused_forecast_kernel(xc_ref, wcomb_ref, posb_ref, whh_ref,
                          wproj_ref, bproj_ref, o_ref, *, pred_len):
    Bt, L, E = xc_ref.shape
    D = whh_ref.shape[0]

    # --- embedding + RNN input projection, fused into ONE matmul ------------
    # (Bt, L, E) -> (Bt*L, E): collapse of an 8-aligned sublane dim, cheap.
    xc = xc_ref[...].reshape(Bt * L, E)
    xw = jnp.dot(xc, wcomb_ref[...], preferred_element_type=jnp.float32)
    xw = xw.reshape(Bt, L, D) + posb_ref[...][None, :, :]        # (Bt, L, D)

    # --- batched serial recurrence (static unroll, L is compile-time) -------
    whh = whh_ref[...]
    wproj = wproj_ref[...]
    bproj = bproj_ref[...]

    h = jnp.zeros((Bt, D), jnp.float32)
    ys = []                                   # projected outputs only: (Bt, C) each
    for t in range(L):
        h = jnp.tanh(jnp.dot(h, whh, preferred_element_type=jnp.float32)
                     + xw[:, t, :])
        if t >= L - pred_len:                 # keep / project only the needed states
            ys.append(jnp.dot(h, wproj, preferred_element_type=jnp.float32) + bproj)

    # Single lane-packed store: (Bt, pred_len*C); wrapper reshapes to (B, P, C).
    o_ref[...] = jnp.concatenate(ys, axis=-1).astype(o_ref.dtype)


# ----------------------------------------------------------------------------
# Wrapper
# ----------------------------------------------------------------------------
def rnn_forecast(x_enc, x_mark_enc, params, pred_len, block_b=None):
    B, L, C = x_enc.shape
    Ft = x_mark_enc.shape[-1]
    D = params["w_ih_t"].shape[0]
    assert pred_len <= L, "projection uses the last pred_len encoder outputs"

    # ---- layout plumbing (no compute hoisted): circular shifts + channel concat
    # Conv1d(k=3, pad=1, circular) taps: x[t-1], x[t], x[t+1].
    x_prev = jnp.roll(x_enc, 1, axis=1)
    x_next = jnp.roll(x_enc, -1, axis=1)
    x_cat = jnp.concatenate([x_prev, x_enc, x_next, x_mark_enc], axis=-1)  # (B,L,3C+F)
    E = 3 * C + Ft

    # ---- fold embedding weights + RNN input projection into one weight ------
    w_embed = jnp.concatenate(
        [params["w_conv"][0], params["w_conv"][1], params["w_conv"][2],
         params["w_time"]], axis=0)                                  # (E, D)
    w_comb = w_embed @ params["w_ih_t"]                              # (E, D)
    posb = params["pos"] @ params["w_ih_t"] + params["b_rnn"]        # (L, D)

    # ---- batch tiling: one grid step per tile (grid=(1,) for small B) -------
    if block_b is None:
        block_b = B if B <= 512 else 512
    n_tiles = -(-B // block_b)
    Bp = n_tiles * block_b
    if Bp != B:
        x_cat = jnp.pad(x_cat, ((0, Bp - B), (0, 0), (0, 0)))

    kernel = functools.partial(fused_forecast_kernel, pred_len=pred_len)

    out = pl.pallas_call(
        kernel,
        out_shape=jax.ShapeDtypeStruct((Bp, pred_len * C), jnp.float32),
        grid=(n_tiles,),
        in_specs=[
            pl.BlockSpec((block_b, L, E), lambda b: (b, 0, 0)),   # fused inputs
            pl.BlockSpec((E, D), lambda b: (0, 0)),               # W_comb
            pl.BlockSpec((L, D), lambda b: (0, 0)),               # pos@W_ih^T + biases
            pl.BlockSpec((D, D), lambda b: (0, 0)),               # W_hh^T
            pl.BlockSpec((D, C), lambda b: (0, 0)),               # W_proj^T
            pl.BlockSpec((1, C), lambda b: (0, 0)),               # b_proj
        ],
        out_specs=pl.BlockSpec((block_b, pred_len * C), lambda b: (b, 0)),
        compiler_params=pltpu.CompilerParams(
            dimension_semantics=("parallel",)),
    )(x_cat, w_comb, posb, params["w_hh_t"], params["w_proj_t"], params["b_proj"])

    return out[:B].reshape(B, pred_len, C)


# ----------------------------------------------------------------------------
# Deterministic parameter construction (shapes implied by the module __init__)
# ----------------------------------------------------------------------------
def make_params(key, enc_in, d_model, n_time_feat, seq_len):
    k_conv, k_time, k_ih, k_hh, k_bih, k_bhh, k_pw, k_pb = jax.random.split(key, 8)
    scale = 0.1

    # TokenEmbedding: Conv1d(enc_in, d_model, 3, padding=1, circular, bias=False);
    # stored as (3 taps, enc_in, d_model), each tap is a (C, D) matmul weight.
    w_conv = scale * jax.random.normal(k_conv, (3, enc_in, d_model), jnp.float32)

    # TemporalEmbedding (timeF): Linear(n_time_feat, d_model, bias=False), pre-transposed.
    w_time = scale * jax.random.normal(k_time, (n_time_feat, d_model), jnp.float32)

    # PositionalEmbedding: sinusoidal (computed once, plain JAX glue).
    pos = jnp.arange(seq_len, dtype=jnp.float32)[:, None]
    div = jnp.exp(jnp.arange(0, d_model, 2, dtype=jnp.float32)
                  * (-math.log(10000.0) / d_model))
    pe = jnp.zeros((seq_len, d_model), jnp.float32)
    pe = pe.at[:, 0::2].set(jnp.sin(pos * div))
    pe = pe.at[:, 1::2].set(jnp.cos(pos * div))

    # nn.RNN(d_model, d_model, num_layers=1, batch_first=True): weights pre-transposed;
    # b_ih and b_hh pre-summed (they always appear added together).
    w_ih_t = scale * jax.random.normal(k_ih, (d_model, d_model), jnp.float32)
    w_hh_t = scale * jax.random.normal(k_hh, (d_model, d_model), jnp.float32)
    b_rnn = (scale * jax.random.normal(k_bih, (1, d_model), jnp.float32)
             + scale * jax.random.normal(k_bhh, (1, d_model), jnp.float32))

    # projection: Linear(d_model, enc_in), pre-transposed.
    w_proj_t = scale * jax.random.normal(k_pw, (d_model, enc_in), jnp.float32)
    b_proj = scale * jax.random.normal(k_pb, (1, enc_in), jnp.float32)

    return dict(w_conv=w_conv, w_time=w_time, pos=pe,
                w_ih_t=w_ih_t, w_hh_t=w_hh_t, b_rnn=b_rnn,
                w_proj_t=w_proj_t, b_proj=b_proj)


if __name__ == "__main__":
    # configs: seq_len=8, pred_len=4, enc_in=4, d_model=32, freq='h' (4 time feats),
    # e_layers=1, embed='timeF'
    B, L, P, C, D, Ft = 2, 8, 4, 4, 32, 4

    key = jax.random.PRNGKey(0)
    k_x, k_m, k_p = jax.random.split(key, 3)

    x_enc = jax.random.normal(k_x, (B, L, C), jnp.float32)
    x_mark_enc = jax.random.normal(k_m, (B, L, Ft), jnp.float32)
    # x_dec / x_mark_dec are unused by the forward pass of this model.

    params = make_params(k_p, C, D, Ft, L)

    out = rnn_forecast(x_enc, x_mark_enc, params, P)
    out = jax.block_until_ready(out)
    assert out.shape == (B, P, C)
    assert bool(jnp.all(jnp.isfinite(out)))
    print("KERNEL_OK")
</pallas_src>

<mosaic_0001>
module attributes {stable_mosaic.version = 11 : i64} {
  func.func @fused_forecast_kernel(%arg0: i32, %arg1: memref<2x8x16xf32, #tpu.memory_space<vmem>>, %arg2: memref<16x32xf32, #tpu.memory_space<vmem>>, %arg3: memref<8x32xf32, #tpu.memory_space<vmem>>, %arg4: memref<32x32xf32, #tpu.memory_space<vmem>>, %arg5: memref<32x4xf32, #tpu.memory_space<vmem>>, %arg6: memref<1x4xf32, #tpu.memory_space<vmem>>, %arg7: memref<2x16xf32, #tpu.memory_space<vmem>>) attributes {dimension_semantics = [#tpu.dimension_semantics<parallel>], iteration_bounds = array<i64: 1>, scalar_prefetch = 0 : i64, scratch_operands = 0 : i64, tpu.core_type = #tpu.core_type<tc>, window_params = [{transform_indices = @transform_0, window_bounds = array<i64: 2, 8, 16>}, {pipeline_mode = #tpu.pipeline_mode<synchronous>, transform_indices = @transform_1, window_bounds = array<i64: 16, 32>}, {pipeline_mode = #tpu.pipeline_mode<synchronous>, transform_indices = @transform_2, window_bounds = array<i64: 8, 32>}, {pipeline_mode = #tpu.pipeline_mode<synchronous>, transform_indices = @transform_3, window_bounds = array<i64: 32, 32>}, {pipeline_mode = #tpu.pipeline_mode<synchronous>, transform_indices = @transform_4, window_bounds = array<i64: 32, 4>}, {pipeline_mode = #tpu.pipeline_mode<synchronous>, transform_indices = @transform_5, window_bounds = array<i64: 1, 4>}, {transform_indices = @transform_6, window_bounds = array<i64: 2, 16>}]} {
    %c0 = arith.constant 0 : index
    %c0_0 = arith.constant 0 : index
    %c0_1 = arith.constant 0 : index
    %0 = vector.load %arg1[%c0, %c0_0, %c0_1] : memref<2x8x16xf32, #tpu.memory_space<vmem>>, vector<2x8x16xf32>
    %1 = vector.shape_cast %0 : vector<2x8x16xf32> to vector<16x16xf32>
    %c0_2 = arith.constant 0 : index
    %c0_3 = arith.constant 0 : index
    %2 = vector.load %arg2[%c0_2, %c0_3] : memref<16x32xf32, #tpu.memory_space<vmem>>, vector<16x32xf32>
    %cst = arith.constant dense<0.000000e+00> : vector<16x32xf32>
    %3 = tpu.matmul %1, %2, %cst {dimension_numbers = #tpu.dot_dimension_numbers<[1], [0], [0], [1], [0, 0, 1, 1], [], []>} : vector<16x16xf32>, vector<16x32xf32>, vector<16x32xf32> -> vector<16x32xf32>
    %4 = vector.shape_cast %3 : vector<16x32xf32> to vector<2x8x32xf32>
    %c0_4 = arith.constant 0 : index
    %c0_5 = arith.constant 0 : index
    %5 = vector.load %arg3[%c0_4, %c0_5] : memref<8x32xf32, #tpu.memory_space<vmem>>, vector<8x32xf32>
    %6 = vector.shape_cast %5 : vector<8x32xf32> to vector<1x8x32xf32>
    %7 = vector.broadcast %6 : vector<1x8x32xf32> to vector<2x8x32xf32>
    %8 = arith.addf %4, %7 : vector<2x8x32xf32>
    %c0_6 = arith.constant 0 : index
    %c0_7 = arith.constant 0 : index
    %9 = vector.load %arg4[%c0_6, %c0_7] : memref<32x32xf32, #tpu.memory_space<vmem>>, vector<32x32xf32>
    %c0_8 = arith.constant 0 : index
    %c0_9 = arith.constant 0 : index
    %10 = vector.load %arg5[%c0_8, %c0_9] : memref<32x4xf32, #tpu.memory_space<vmem>>, vector<32x4xf32>
    %c0_10 = arith.constant 0 : index
    %c0_11 = arith.constant 0 : index
    %11 = vector.load %arg6[%c0_10, %c0_11] : memref<1x4xf32, #tpu.memory_space<vmem>>, vector<1x4xf32>
    %cst_12 = arith.constant 0.000000e+00 : f32
    %12 = vector.broadcast %cst_12 : f32 to vector<2x32xf32>
    %cst_13 = arith.constant dense<0.000000e+00> : vector<2x32xf32>
    %13 = tpu.matmul %12, %9, %cst_13 {dimension_numbers = #tpu.dot_dimension_numbers<[1], [0], [0], [1], [0, 0, 1, 1], [], []>} : vector<2x32xf32>, vector<32x32xf32>, vector<2x32xf32> -> vector<2x32xf32>
    %14 = vector.extract_strided_slice %8 {offsets = [0, 0, 0], sizes = [2, 1, 32], strides = [1, 1, 1]} : vector<2x8x32xf32> to vector<2x1x32xf32>
    %15 = vector.shape_cast %14 : vector<2x1x32xf32> to vector<2x32xf32>
    %16 = arith.addf %13, %15 : vector<2x32xf32>
    %17 = math.tanh %16 : vector<2x32xf32>
    %cst_14 = arith.constant dense<0.000000e+00> : vector<2x32xf32>
    %18 = tpu.matmul %17, %9, %cst_14 {dimension_numbers = #tpu.dot_dimension_numbers<[1], [0], [0], [1], [0, 0, 1, 1], [], []>} : vector<2x32xf32>, vector<32x32xf32>, vector<2x32xf32> -> vector<2x32xf32>
    %19 = vector.extract_strided_slice %8 {offsets = [0, 1, 0], sizes = [2, 1, 32], strides = [1, 1, 1]} : vector<2x8x32xf32> to vector<2x1x32xf32>
    %20 = vector.shape_cast %19 : vector<2x1x32xf32> to vector<2x32xf32>
    %21 = arith.addf %18, %20 : vector<2x32xf32>
    %22 = math.tanh %21 : vector<2x32xf32>
    %cst_15 = arith.constant dense<0.000000e+00> : vector<2x32xf32>
    %23 = tpu.matmul %22, %9, %cst_15 {dimension_numbers = #tpu.dot_dimension_numbers<[1], [0], [0], [1], [0, 0, 1, 1], [], []>} : vector<2x32xf32>, vector<32x32xf32>, vector<2x32xf32> -> vector<2x32xf32>
    %24 = vector.extract_strided_slice %8 {offsets = [0, 2, 0], sizes = [2, 1, 32], strides = [1, 1, 1]} : vector<2x8x32xf32> to vector<2x1x32xf32>
    %25 = vector.shape_cast %24 : vector<2x1x32xf32> to vector<2x32xf32>
    %26 = arith.addf %23, %25 : vector<2x32xf32>
    %27 = math.tanh %26 : vector<2x32xf32>
    %cst_16 = arith.constant dense<0.000000e+00> : vector<2x32xf32>
    %28 = tpu.matmul %27, %9, %cst_16 {dimension_numbers = #tpu.dot_dimension_numbers<[1], [0], [0], [1], [0, 0, 1, 1], [], []>} : vector<2x32xf32>, vector<32x32xf32>, vector<2x32xf32> -> vector<2x32xf32>
    %29 = vector.extract_strided_slice %8 {offsets = [0, 3, 0], sizes = [2, 1, 32], strides = [1, 1, 1]} : vector<2x8x32xf32> to vector<2x1x32xf32>
    %30 = vector.shape_cast %29 : vector<2x1x32xf32> to vector<2x32xf32>
    %31 = arith.addf %28, %30 : vector<2x32xf32>
    %32 = math.tanh %31 : vector<2x32xf32>
    %cst_17 = arith.constant dense<0.000000e+00> : vector<2x32xf32>
    %33 = tpu.matmul %32, %9, %cst_17 {dimension_numbers = #tpu.dot_dimension_numbers<[1], [0], [0], [1], [0, 0, 1, 1], [], []>} : vector<2x32xf32>, vector<32x32xf32>, vector<2x32xf32> -> vector<2x32xf32>
    %34 = vector.extract_strided_slice %8 {offsets = [0, 4, 0], sizes = [2, 1, 32], strides = [1, 1, 1]} : vector<2x8x32xf32> to vector<2x1x32xf32>
    %35 = vector.shape_cast %34 : vector<2x1x32xf32> to vector<2x32xf32>
    %36 = arith.addf %33, %35 : vector<2x32xf32>
    %37 = math.tanh %36 : vector<2x32xf32>
    %cst_18 = arith.constant dense<0.000000e+00> : vector<2x4xf32>
    %38 = tpu.matmul %37, %10, %cst_18 {dimension_numbers = #tpu.dot_dimension_numbers<[1], [0], [0], [1], [0, 0, 1, 1], [], []>} : vector<2x32xf32>, vector<32x4xf32>, vector<2x4xf32> -> vector<2x4xf32>
    %39 = vector.broadcast %11 : vector<1x4xf32> to vector<2x4xf32>
    %40 = arith.addf %38, %39 : vector<2x4xf32>
    %cst_19 = arith.constant dense<0.000000e+00> : vector<2x32xf32>
    %41 = tpu.matmul %37, %9, %cst_19 {dimension_numbers = #tpu.dot_dimension_numbers<[1], [0], [0], [1], [0, 0, 1, 1], [], []>} : vector<2x32xf32>, vector<32x32xf32>, vector<2x32xf32> -> vector<2x32xf32>
    %42 = vector.extract_strided_slice %8 {offsets = [0, 5, 0], sizes = [2, 1, 32], strides = [1, 1, 1]} : vector<2x8x32xf32> to vector<2x1x32xf32>
    %43 = vector.shape_cast %42 : vector<2x1x32xf32> to vector<2x32xf32>
    %44 = arith.addf %41, %43 : vector<2x32xf32>
    %45 = math.tanh %44 : vector<2x32xf32>
    %cst_20 = arith.constant dense<0.000000e+00> : vector<2x4xf32>
    %46 = tpu.matmul %45, %10, %cst_20 {dimension_numbers = #tpu.dot_dimension_numbers<[1], [0], [0], [1], [0, 0, 1, 1], [], []>} : vector<2x32xf32>, vector<32x4xf32>, vector<2x4xf32> -> vector<2x4xf32>
    %47 = vector.broadcast %11 : vector<1x4xf32> to vector<2x4xf32>
    %48 = arith.addf %46, %47 : vector<2x4xf32>
    %cst_21 = arith.constant dense<0.000000e+00> : vector<2x32xf32>
    %49 = tpu.matmul %45, %9, %cst_21 {dimension_numbers = #tpu.dot_dimension_numbers<[1], [0], [0], [1], [0, 0, 1, 1], [], []>} : vector<2x32xf32>, vector<32x32xf32>, vector<2x32xf32> -> vector<2x32xf32>
    %50 = vector.extract_strided_slice %8 {offsets = [0, 6, 0], sizes = [2, 1, 32], strides = [1, 1, 1]} : vector<2x8x32xf32> to vector<2x1x32xf32>
    %51 = vector.shape_cast %50 : vector<2x1x32xf32> to vector<2x32xf32>
    %52 = arith.addf %49, %51 : vector<2x32xf32>
    %53 = math.tanh %52 : vector<2x32xf32>
    %cst_22 = arith.constant dense<0.000000e+00> : vector<2x4xf32>
    %54 = tpu.matmul %53, %10, %cst_22 {dimension_numbers = #tpu.dot_dimension_numbers<[1], [0], [0], [1], [0, 0, 1, 1], [], []>} : vector<2x32xf32>, vector<32x4xf32>, vector<2x4xf32> -> vector<2x4xf32>
    %55 = vector.broadcast %11 : vector<1x4xf32> to vector<2x4xf32>
    %56 = arith.addf %54, %55 : vector<2x4xf32>
    %cst_23 = arith.constant dense<0.000000e+00> : vector<2x32xf32>
    %57 = tpu.matmul %53, %9, %cst_23 {dimension_numbers = #tpu.dot_dimension_numbers<[1], [0], [0], [1], [0, 0, 1, 1], [], []>} : vector<2x32xf32>, vector<32x32xf32>, vector<2x32xf32> -> vector<2x32xf32>
    %58 = vector.extract_strided_slice %8 {offsets = [0, 7, 0], sizes = [2, 1, 32], strides = [1, 1, 1]} : vector<2x8x32xf32> to vector<2x1x32xf32>
    %59 = vector.shape_cast %58 : vector<2x1x32xf32> to vector<2x32xf32>
    %60 = arith.addf %57, %59 : vector<2x32xf32>
    %61 = math.tanh %60 : vector<2x32xf32>
    %cst_24 = arith.constant dense<0.000000e+00> : vector<2x4xf32>
    %62 = tpu.matmul %61, %10, %cst_24 {dimension_numbers = #tpu.dot_dimension_numbers<[1], [0], [0], [1], [0, 0, 1, 1], [], []>} : vector<2x32xf32>, vector<32x4xf32>, vector<2x4xf32> -> vector<2x4xf32>
    %63 = vector.broadcast %11 : vector<1x4xf32> to vector<2x4xf32>
    %64 = arith.addf %62, %63 : vector<2x4xf32>
    %65 = tpu.concatenate %40, %48, %56, %64 in 1 : vector<2x4xf32>, vector<2x4xf32>, vector<2x4xf32>, vector<2x4xf32> -> vector<2x16xf32>
    %c0_25 = arith.constant 0 : index
    %c0_26 = arith.constant 0 : index
    %66 = vector.load %arg7[%c0_25, %c0_26] : memref<2x16xf32, #tpu.memory_space<vmem>>, vector<2x16xf32>
    tpu.vector_store %arg7[%c0_25, %c0_26], %65 {strides = array<i32>} : memref<2x16xf32, #tpu.memory_space<vmem>>, vector<2x16xf32>,
    return
  }
  func.func @transform_0(%arg0: i32) -> (i32, i32, i32) {
    %c0_i32 = arith.constant 0 : i32
    %c0_i32_0 = arith.constant 0 : i32
    %c0_i32_1 = arith.constant 0 : i32
    return %arg0, %c0_i32, %c0_i32_0 : i32, i32, i32
  }
  func.func @transform_1(%arg0: i32) -> (i32, i32) {
    %c0_i32 = arith.constant 0 : i32
    %c0_i32_0 = arith.constant 0 : i32
    %c0_i32_1 = arith.constant 0 : i32
    return %c0_i32, %c0_i32_0 : i32, i32
  }
  func.func @transform_2(%arg0: i32) -> (i32, i32) {
    %c0_i32 = arith.constant 0 : i32
    %c0_i32_0 = arith.constant 0 : i32
    %c0_i32_1 = arith.constant 0 : i32
    return %c0_i32, %c0_i32_0 : i32, i32
  }
  func.func @transform_3(%arg0: i32) -> (i32, i32) {
    %c0_i32 = arith.constant 0 : i32
    %c0_i32_0 = arith.constant 0 : i32
    %c0_i32_1 = arith.constant 0 : i32
    return %c0_i32, %c0_i32_0 : i32, i32
  }
  func.func @transform_4(%arg0: i32) -> (i32, i32) {
    %c0_i32 = arith.constant 0 : i32
    %c0_i32_0 = arith.constant 0 : i32
    %c0_i32_1 = arith.constant 0 : i32
    return %c0_i32, %c0_i32_0 : i32, i32
  }
  func.func @transform_5(%arg0: i32) -> (i32, i32) {
    %c0_i32 = arith.constant 0 : i32
    %c0_i32_0 = arith.constant 0 : i32
    %c0_i32_1 = arith.constant 0 : i32
    return %c0_i32, %c0_i32_0 : i32, i32
  }
  func.func @transform_6(%arg0: i32) -> (i32, i32) {
    %c0_i32 = arith.constant 0 : i32
    %c0_i32_0 = arith.constant 0 : i32
    return %arg0, %c0_i32 : i32, i32
  }
}

</mosaic_0001>

<llo_original>
// kernel: tpu_custom_call.1
$region0: #{tpu_custom_call.1}
  #allocation0 [shape = 'u32[]', space=smem, size = 0x4, offset = 0x4, fixed_abs, tag = 'smem constant byte address 0x4 - core index']
  #allocation1 [shape = 'u32[144,128]{1,0:T(1,128)}', space=vmem, size = 0x12000, scoped, tag = 'internal scratch']
  %s0 = inlined_call_operand.hbm [shape: f32[2,8,16], index: 0, kind: input, shape index: {}]
  %s1 = inlined_call_operand.hbm [shape: f32[16,32], index: 1, kind: input, shape index: {}]
  %s2 = inlined_call_operand.vmem [shape: f32[8,32], index: 2, kind: input, shape index: {}]
  %s3 = inlined_call_operand.vmem [shape: f32[32,32], index: 3, kind: input, shape index: {}]
  %s4 = inlined_call_operand.vmem [shape: f32[32,4], index: 4, kind: input, shape index: {}]
  %s5 = inlined_call_operand.vmem [shape: f32[1,4], index: 5, kind: input, shape index: {}]
  %s6 = inlined_call_operand.hbm [shape: f32[2,16], index: 6, kind: output, shape index: {}]
  %s7 = sld [smem:[#allocation0]]
  $region42: #{tpu_custom_call.1} parent=0
    _
  %s9 = ssub.s32 1, %s7
  %s10 = scalar_select 0, %s9, %s7
  $region1: #{tpu_custom_call.1} parent=0
    #allocation2 [shape = 'u8[8192]{0}', space=vmem, size = 0x2000, scoped, tag = 'input window, operand 0, single buffered']
    #allocation3 [shape = 's32[1]{0}', space=sflag, size = 0x4, scoped, tag = 'scoped memory for tpu_custom_call.1']
    #allocation4 [shape = 's32[1]{0}', space=sflag, size = 0x4, scoped, tag = 'scoped memory for tpu_custom_call.1']
    #allocation5 [shape = 'u8[8192]{0}', space=vmem, size = 0x2000, scoped, tag = 'input window, operand 1, single buffered']
    #allocation6 [shape = 's32[1]{0}', space=sflag, size = 0x4, scoped, tag = 'scoped memory for tpu_custom_call.1']
    #allocation7 [shape = 'u8[1024]{0}', space=vmem, size = 0x400, scoped, tag = 'output window, operand 0, single buffered']
    %11 = vsyncpa [#allocation3], 0
    %12 = vsyncpa [#allocation6], 0
    %13 = vsyncpa [#allocation4], 0
    // Predicated region
    $region2: #{tpu_custom_call.1} parent=1 // pred_check
      _
    $region3: #{tpu_custom_call.1} parent=1 // pred_check_branch
      %15 = sbr.rel (0) target = $region5
    $region4: #{tpu_custom_call.1} parent=1 // pred_region
      %s17 = ssub.s32 256, 256
      %18 = vsyncadd [#allocation3], %s17
      %s19 = sshll.u32 [#allocation2], 4
      %s20 = int_to_ptr.vmem [resolvable:$true] %s19
      %25 = dma.hbm_to_vmem [thread:$0]  %s0, 256, %s20, [#allocation3], 128, 128, 8
    $region5: #{tpu_custom_call.1} parent=1 // pred_fallthru
      _
    // Predicated region
    $region6: #{tpu_custom_call.1} parent=1 // pred_check
      _
    $region7: #{tpu_custom_call.1} parent=1 // pred_check_branch
      %27 = sbr.rel (0) target = $region9
    $region8: #{tpu_custom_call.1} parent=1 // pred_region
      %s29 = ssub.s32 256, 256
      %30 = vsyncadd [#allocation6], %s29
      %s31 = sshll.u32 [#allocation5], 4
      %s32 = int_to_ptr.vmem [resolvable:$true] %s31
      %37 = dma.hbm_to_vmem [thread:$0]  %s1, 256, %s32, [#allocation6], 128, 128, 8
    $region9: #{tpu_custom_call.1} parent=1 // pred_fallthru
      _
    // Predicated region
    $region10: #{tpu_custom_call.1} parent=1 // pred_check
      _
    $region11: #{tpu_custom_call.1} parent=1 // pred_check_branch
      %39 = sbr.rel (0) target = $region13
    $region12: #{tpu_custom_call.1} parent=1 // pred_region
      _
    $region13: #{tpu_custom_call.1} parent=1 // pred_fallthru
      _
    // Predicated region
    $region14: #{tpu_custom_call.1} parent=1 // pred_check
      _
    $region15: #{tpu_custom_call.1} parent=1 // pred_check_branch
      %41 = sbr.rel (0) target = $region17
    $region16: #{tpu_custom_call.1} parent=1 // pred_region
      _
    $region17: #{tpu_custom_call.1} parent=1 // pred_fallthru
      _
    // Predicated region
    $region18: #{tpu_custom_call.1} parent=1 // pred_check
      _
    $region19: #{tpu_custom_call.1} parent=1 // pred_check_branch
      %43 = sbr.rel (0) target = $region21
    $region20: #{tpu_custom_call.1} parent=1 // pred_region
      _
    $region21: #{tpu_custom_call.1} parent=1 // pred_fallthru
      _
    // Predicated region
    $region22: #{tpu_custom_call.1} parent=1 // pred_check
      _
    $region23: #{tpu_custom_call.1} parent=1 // pred_check_branch
      %45 = sbr.rel (0) target = $region25
    $region24: #{tpu_custom_call.1} parent=1 // pred_region
      _
    $region25: #{tpu_custom_call.1} parent=1 // pred_fallthru
      _
    // Predicated region
    $region26: #{tpu_custom_call.1} parent=1 // pred_check
      _
    $region27: #{tpu_custom_call.1} parent=1 // pred_check_branch
      %47 = sbr.rel (0) target = $region29
    $region28: #{tpu_custom_call.1} parent=1 // pred_region
      %48 = dma.done [#allocation3], 256
    $region29: #{tpu_custom_call.1} parent=1 // pred_fallthru
      _
    // Predicated region
    $region30: #{tpu_custom_call.1} parent=1 // pred_check
      _
    $region31: #{tpu_custom_call.1} parent=1 // pred_check_branch
      %50 = sbr.rel (0) target = $region33
    $region32: #{tpu_custom_call.1} parent=1 // pred_region
      %51 = dma.done [#allocation6], 256
    $region33: #{tpu_custom_call.1} parent=1 // pred_fallthru
      _
    %v52 = vld [vmem:[#allocation2] sm:$0xff]
    %v53 = vld [vmem:[#allocation2 + $0x8] sm:$0xff]
    %v54 = vld [vmem:[#allocation5] sm:$0xff]
    %v55 = vld [vmem:[#allocation5 + $0x8] sm:$0xff]
    %vm56 = vcmask 130048
    %v58 = vsel %vm56, %v52, 0
    %v61 = vsel %vm56, %v53, 0
    %63 = vmatprep.subr.mxu0 0.0
    %64 = vmatpush1.msra.mxu0 %v54
    %65 = vmatprep.subr.mxu0 0.0
    %66 = vmatpush1.msra.mxu0 %v55
    %67 = vmatprep.subr.mxu0 0.0
    %68 = vmatpush1.msra.mxu0 0.0
    %69 = vmatprep.subr.mxu0 0.0
    %70 = vmatpush1.msra.mxu0 0.0
    %71 = vmatprep.subr.mxu0 0.0
    %72 = vmatpush1.msra.mxu0 0.0
    %73 = vmatprep.subr.mxu0 0.0
    %74 = vmatpush1.msra.mxu0 0.0
    %75 = vmatprep.subr.mxu0 0.0
    %76 = vmatpush1.msra.mxu0 0.0
    %77 = vmatprep.subr.mxu0 0.0
    %78 = vmatpush1.msra.mxu0 0.0
    %79 = vmatprep.subr.mxu0 0.0
    %80 = vmatpush1.msra.mxu0 0.0
    %81 = vmatprep.subr.mxu0 0.0
    %82 = vmatpush1.msra.mxu0 0.0
    %83 = vmatprep.subr.mxu0 0.0
    %84 = vmatpush1.msra.mxu0 0.0
    %85 = vmatprep.subr.mxu0 0.0
    %86 = vmatpush1.msra.mxu0 0.0
    %87 = vmatprep.subr.mxu0 0.0
    %88 = vmatpush1.msra.mxu0 0.0
    %89 = vmatprep.subr.mxu0 0.0
    %90 = vmatpush1.msra.mxu0 0.0
    %91 = vmatprep.subr.mxu0 0.0
    %92 = vmatpush1.msra.mxu0 0.0
    %93 = vmatprep.subr.mxu0 0.0
    %94 = vmatpush1.msra.mxu0 0.0
    %95 = vmatprep.subr.mxu0 0.0
    %96 = vmatpush1.msra.mxu0 0.0
    %97 = vmatprep.subr.mxu0 0.0
    %98 = vmatpush1.msra.mxu0 0.0
    %99 = vmatprep.subr.mxu0 0.0
    %100 = vmatpush1.msra.mxu0 0.0
    %101 = vmatprep.subr.mxu0 0.0
    %102 = vmatpush1.msra.mxu0 0.0
    %103 = vmatprep.subr.mxu0 0.0
    %104 = vmatpush1.msra.mxu0 0.0
    %105 = vmatprep.subr.mxu0 0.0
    %106 = vmatpush1.msra.mxu0 0.0
    %107 = vmatprep.subr.mxu0 0.0
    %108 = vmatpush1.msra.mxu0 0.0
    %109 = vmatprep.subr.mxu0 0.0
    %110 = vmatpush1.msra.mxu0 0.0
    %111 = vmatprep.subr.mxu0 0.0
    %112 = vmatpush1.msra.mxu0 0.0
    %113 = vmatprep.subr.mxu0 0.0
    %114 = vmatpush1.msra.mxu0 0.0
    %115 = vmatprep.subr.mxu0 0.0
    %116 = vmatpush1.msra.mxu0 0.0
    %117 = vmatprep.subr.mxu0 0.0
    %118 = vmatpush1.msra.mxu0 0.0
    %119 = vmatprep.subr.mxu0 0.0
    %120 = vmatpush1.msra.mxu0 0.0
    %121 = vmatprep.subr.mxu0 0.0
    %122 = vmatpush1.msra.mxu0 0.0
    %123 = vmatprep.subr.mxu0 0.0
    %124 = vmatpush1.msra.mxu0 0.0
    %125 = vmatprep.subr.mxu0 0.0
    %126 = vmatpush1.msra.mxu0 0.0
    %127 = vmatprep.mubr.f32.mxu0 0.0
    %128 = vmatmul.mubr.f32.gmra.mrb[0].mxu0 %v58
    %v129 = vpop.f32.mrb[0].mxu0
    %v130 = vadd.f32 0.0, %v129
    %v131 = vpop.f32.mrb[0].mxu0
    %132 = vmatprep.mubr.f32.mxu0 0.0
    %133 = vmatmul.mubr.f32.gmra.mrb[0].mxu0 %v61
    %v134 = vpop.f32.mrb[0].mxu0
    %v135 = vadd.f32 0.0, %v134
    %v136 = vpop.f32.mrb[0].mxu0
    %137 = vdwg.mxu0
    %v138 = vld [vmem:[%s2] sm:$0xff]
    %v139 = vadd.f32 %v130, %v138
    %v140 = vadd.f32 %v135, %v138
    %v141 = vld [vmem:[%s3] sm:$0xff]
    %v142 = vld [vmem:[%s3 + $0x8] sm:$0xff]
    %v143 = vld [vmem:[%s3 + $0x10] sm:$0xff]
    %v144 = vld [vmem:[%s3 + $0x18] sm:$0xff]
    %v145 = vld [vmem:[%s4] sm:$0xff]
    %v146 = vld [vmem:[%s4 + $0x8] sm:$0xff]
    %v147 = vld [vmem:[%s4 + $0x10] sm:$0xff]
    %v148 = vld [vmem:[%s4 + $0x18] sm:$0xff]
    %v149 = vld [vmem:[%s5] sm:$0x1]
    %v152 = vrot.slane %v140, 7
    %vm153 = vcmask 1041409
    %v154 = vsel %vm153, %v152, %v139
    %vm156 = vcmask 261120
    %v158 = vsel %vm156, 0.0, 0
    %160 = vmatprep.subr.mxu0 0.0
    %161 = vmatpush1.msra.mxu0 %v141
    %162 = vmatprep.subr.mxu0 0.0
    %163 = vmatpush1.msra.mxu0 %v142
    %164 = vmatprep.subr.mxu0 0.0
    %165 = vmatpush1.msra.mxu0 %v143
    %166 = vmatprep.subr.mxu0 0.0
    %167 = vmatpush1.msra.mxu0 %v144
    %168 = vmatprep.subr.mxu0 0.0
    %169 = vmatpush1.msra.mxu0 0.0
    %170 = vmatprep.subr.mxu0 0.0
    %171 = vmatpush1.msra.mxu0 0.0
    %172 = vmatprep.subr.mxu0 0.0
    %173 = vmatpush1.msra.mxu0 0.0
    %174 = vmatprep.subr.mxu0 0.0
    %175 = vmatpush1.msra.mxu0 0.0
    %176 = vmatprep.subr.mxu0 0.0
    %177 = vmatpush1.msra.mxu0 0.0
    %178 = vmatprep.subr.mxu0 0.0
    %179 = vmatpush1.msra.mxu0 0.0
    %180 = vmatprep.subr.mxu0 0.0
    %181 = vmatpush1.msra.mxu0 0.0
    %182 = vmatprep.subr.mxu0 0.0
    %183 = vmatpush1.msra.mxu0 0.0
    %184 = vmatprep.subr.mxu0 0.0
    %185 = vmatpush1.msra.mxu0 0.0
    %186 = vmatprep.subr.mxu0 0.0
    %187 = vmatpush1.msra.mxu0 0.0
    %188 = vmatprep.subr.mxu0 0.0
    %189 = vmatpush1.msra.mxu0 0.0
    %190 = vmatprep.subr.mxu0 0.0
    %191 = vmatpush1.msra.mxu0 0.0
    %192 = vmatprep.subr.mxu0 0.0
    %193 = vmatpush1.msra.mxu0 0.0
    %194 = vmatprep.subr.mxu0 0.0
    %195 = vmatpush1.msra.mxu0 0.0
    %196 = vmatprep.subr.mxu0 0.0
    %197 = vmatpush1.msra.mxu0 0.0
    %198 = vmatprep.subr.mxu0 0.0
    %199 = vmatpush1.msra.mxu0 0.0
    %200 = vmatprep.subr.mxu0 0.0
    %201 = vmatpush1.msra.mxu0 0.0
    %202 = vmatprep.subr.mxu0 0.0
    %203 = vmatpush1.msra.mxu0 0.0
    %204 = vmatprep.subr.mxu0 0.0
    %205 = vmatpush1.msra.mxu0 0.0
    %206 = vmatprep.subr.mxu0 0.0
    %207 = vmatpush1.msra.mxu0 0.0
    %208 = vmatprep.subr.mxu0 0.0
    %209 = vmatpush1.msra.mxu0 0.0
    %210 = vmatprep.subr.mxu0 0.0
    %211 = vmatpush1.msra.mxu0 0.0
    %212 = vmatprep.subr.mxu0 0.0
    %213 = vmatpush1.msra.mxu0 0.0
    %214 = vmatprep.subr.mxu0 0.0
    %215 = vmatpush1.msra.mxu0 0.0
    %216 = vmatprep.subr.mxu0 0.0
    %217 = vmatpush1.msra.mxu0 0.0
    %218 = vmatprep.subr.mxu0 0.0
    %219 = vmatpush1.msra.mxu0 0.0
    %220 = vmatprep.subr.mxu0 0.0
    %221 = vmatpush1.msra.mxu0 0.0
    %222 = vmatprep.subr.mxu0 0.0
    %223 = vmatpush1.msra.mxu0 0.0
    %224 = vmatprep.mubr.f32.mxu0 0.0
    %225 = vmatmul.mubr.f32.gmra.mrb[0].mxu0 %v158
    %v226 = vpop.f32.mrb[0].mxu0
    %v227 = vadd.f32 %v154, %v226
    %v228 = vpop.f32.mrb[0].mxu0
    %229 = vdwg.mxu0
    %v230 = vtanh.pop %v227
    %v231 = vrot.slane %v139, 1
    %v232 = vsel %vm153, %v140, %v231
    %v235 = vsel %vm156, %v230, 0
    %237 = vmatprep.subr.mxu0 0.0
    %238 = vmatpush1.msra.mxu0 %v141
    %239 = vmatprep.subr.mxu0 0.0
    %240 = vmatpush1.msra.mxu0 %v142
    %241 = vmatprep.subr.mxu0 0.0
    %242 = vmatpush1.msra.mxu0 %v143
    %243 = vmatprep.subr.mxu0 0.0
    %244 = vmatpush1.msra.mxu0 %v144
    %245 = vmatprep.subr.mxu0 0.0
    %246 = vmatpush1.msra.mxu0 0.0
    %247 = vmatprep.subr.mxu0 0.0
    %248 = vmatpush1.msra.mxu0 0.0
    %249 = vmatprep.subr.mxu0 0.0
    %250 = vmatpush1.msra.mxu0 0.0
    %251 = vmatprep.subr.mxu0 0.0
    %252 = vmatpush1.msra.mxu0 0.0
    %253 = vmatprep.subr.mxu0 0.0
    %254 = vmatpush1.msra.mxu0 0.0
    %255 = vmatprep.subr.mxu0 0.0
    %256 = vmatpush1.msra.mxu0 0.0
    %257 = vmatprep.subr.mxu0 0.0
    %258 = vmatpush1.msra.mxu0 0.0
    %259 = vmatprep.subr.mxu0 0.0
    %260 = vmatpush1.msra.mxu0 0.0
    %261 = vmatprep.subr.mxu0 0.0
    %262 = vmatpush1.msra.mxu0 0.0
    %263 = vmatprep.subr.mxu0 0.0
    %264 = vmatpush1.msra.mxu0 0.0
    %265 = vmatprep.subr.mxu0 0.0
    %266 = vmatpush1.msra.mxu0 0.0
    %267 = vmatprep.subr.mxu0 0.0
    %268 = vmatpush1.msra.mxu0 0.0
    %269 = vmatprep.subr.mxu0 0.0
    %270 = vmatpush1.msra.mxu0 0.0
    %271 = vmatprep.subr.mxu0 0.0
    %272 = vmatpush1.msra.mxu0 0.0
    %273 = vmatprep.subr.mxu0 0.0
    %274 = vmatpush1.msra.mxu0 0.0
    %275 = vmatprep.subr.mxu0 0.0
    %276 = vmatpush1.msra.mxu0 0.0
    %277 = vmatprep.subr.mxu0 0.0
    %278 = vmatpush1.msra.mxu0 0.0
    %279 = vmatprep.subr.mxu0 0.0
    %280 = vmatpush1.msra.mxu0 0.0
    %281 = vmatprep.subr.mxu0 0.0
    %282 = vmatpush1.msra.mxu0 0.0
    %283 = vmatprep.subr.mxu0 0.0
    %284 = vmatpush1.msra.mxu0 0.0
    %285 = vmatprep.subr.mxu0 0.0
    %286 = vmatpush1.msra.mxu0 0.0
    %287 = vmatprep.subr.mxu0 0.0
    %288 = vmatpush1.msra.mxu0 0.0
    %289 = vmatprep.subr.mxu0 0.0
    %290 = vmatpush1.msra.mxu0 0.0
    %291 = vmatprep.subr.mxu0 0.0
    %292 = vmatpush1.msra.mxu0 0.0
    %293 = vmatprep.subr.mxu0 0.0
    %294 = vmatpush1.msra.mxu0 0.0
    %295 = vmatprep.subr.mxu0 0.0
    %296 = vmatpush1.msra.mxu0 0.0
    %297 = vmatprep.subr.mxu0 0.0
    %298 = vmatpush1.msra.mxu0 0.0
    %299 = vmatprep.subr.mxu0 0.0
    %300 = vmatpush1.msra.mxu0 0.0
    %301 = vmatprep.mubr.f32.mxu0 0.0
    %302 = vmatmul.mubr.f32.gmra.mrb[0].mxu0 %v235
    %v303 = vpop.f32.mrb[0].mxu0
    %v304 = vadd.f32 %v232, %v303
    %v305 = vpop.f32.mrb[0].mxu0
    %306 = vdwg.mxu0
    %v307 = vtanh.pop %v304
    %v308 = vrot.slane %v139, 2
    %v309 = vrot.slane %v140, 1
    %v310 = vsel %vm153, %v309, %v308
    %v313 = vsel %vm156, %v307, 0
    %315 = vmatprep.subr.mxu0 0.0
    %316 = vmatpush1.msra.mxu0 %v141
    %317 = vmatprep.subr.mxu0 0.0
    %318 = vmatpush1.msra.mxu0 %v142
    %319 = vmatprep.subr.mxu0 0.0
    %320 = vmatpush1.msra.mxu0 %v143
    %321 = vmatprep.subr.mxu0 0.0
    %322 = vmatpush1.msra.mxu0 %v144
    %323 = vmatprep.subr.mxu0 0.0
    %324 = vmatpush1.msra.mxu0 0.0
    %325 = vmatprep.subr.mxu0 0.0
    %326 = vmatpush1.msra.mxu0 0.0
    %327 = vmatprep.subr.mxu0 0.0
    %328 = vmatpush1.msra.mxu0 0.0
    %329 = vmatprep.subr.mxu0 0.0
    %330 = vmatpush1.msra.mxu0 0.0
    %331 = vmatprep.subr.mxu0 0.0
    %332 = vmatpush1.msra.mxu0 0.0
    %333 = vmatprep.subr.mxu0 0.0
    %334 = vmatpush1.msra.mxu0 0.0
    %335 = vmatprep.subr.mxu0 0.0
    %336 = vmatpush1.msra.mxu0 0.0
    %337 = vmatprep.subr.mxu0 0.0
    %338 = vmatpush1.msra.mxu0 0.0
    %339 = vmatprep.subr.mxu0 0.0
    %340 = vmatpush1.msra.mxu0 0.0
    %341 = vmatprep.subr.mxu0 0.0
    %342 = vmatpush1.msra.mxu0 0.0
    %343 = vmatprep.subr.mxu0 0.0
    %344 = vmatpush1.msra.mxu0 0.0
    %345 = vmatprep.subr.mxu0 0.0
    %346 = vmatpush1.msra.mxu0 0.0
    %347 = vmatprep.subr.mxu0 0.0
    %348 = vmatpush1.msra.mxu0 0.0
    %349 = vmatprep.subr.mxu0 0.0
    %350 = vmatpush1.msra.mxu0 0.0
    %351 = vmatprep.subr.mxu0 0.0
    %352 = vmatpush1.msra.mxu0 0.0
    %353 = vmatprep.subr.mxu0 0.0
    %354 = vmatpush1.msra.mxu0 0.0
    %355 = vmatprep.subr.mxu0 0.0
    %356 = vmatpush1.msra.mxu0 0.0
    %357 = vmatprep.subr.mxu0 0.0
    %358 = vmatpush1.msra.mxu0 0.0
    %359 = vmatprep.subr.mxu0 0.0
    %360 = vmatpush1.msra.mxu0 0.0
    %361 = vmatprep.subr.mxu0 0.0
    %362 = vmatpush1.msra.mxu0 0.0
    %363 = vmatprep.subr.mxu0 0.0
    %364 = vmatpush1.msra.mxu0 0.0
    %365 = vmatprep.subr.mxu0 0.0
    %366 = vmatpush1.msra.mxu0 0.0
    %367 = vmatprep.subr.mxu0 0.0
    %368 = vmatpush1.msra.mxu0 0.0
    %369 = vmatprep.subr.mxu0 0.0
    %370 = vmatpush1.msra.mxu0 0.0
    %371 = vmatprep.subr.mxu0 0.0
    %372 = vmatpush1.msra.mxu0 0.0
    %373 = vmatprep.subr.mxu0 0.0
    %374 = vmatpush1.msra.mxu0 0.0
    %375 = vmatprep.subr.mxu0 0.0
    %376 = vmatpush1.msra.mxu0 0.0
    %377 = vmatprep.subr.mxu0 0.0
    %378 = vmatpush1.msra.mxu0 0.0
    %379 = vmatprep.mubr.f32.mxu0 0.0
    %380 = vmatmul.mubr.f32.gmra.mrb[0].mxu0 %v313
    %v381 = vpop.f32.mrb[0].mxu0
    %v382 = vadd.f32 %v310, %v381
    %v383 = vpop.f32.mrb[0].mxu0
    %384 = vdwg.mxu0
    %v385 = vtanh.pop %v382
    %v386 = vrot.slane %v139, 3
    %v387 = vrot.slane %v140, 2
    %v388 = vsel %vm153, %v387, %v386
    %v391 = vsel %vm156, %v385, 0
    %393 = vmatprep.subr.mxu0 0.0
    %394 = vmatpush1.msra.mxu0 %v141
    %395 = vmatprep.subr.mxu0 0.0
    %396 = vmatpush1.msra.mxu0 %v142
    %397 = vmatprep.subr.mxu0 0.0
    %398 = vmatpush1.msra.mxu0 %v143
    %399 = vmatprep.subr.mxu0 0.0
    %400 = vmatpush1.msra.mxu0 %v144
    %401 = vmatprep.subr.mxu0 0.0
    %402 = vmatpush1.msra.mxu0 0.0
    %403 = vmatprep.subr.mxu0 0.0
    %404 = vmatpush1.msra.mxu0 0.0
    %405 = vmatprep.subr.mxu0 0.0
    %406 = vmatpush1.msra.mxu0 0.0
    %407 = vmatprep.subr.mxu0 0.0
    %408 = vmatpush1.msra.mxu0 0.0
    %409 = vmatprep.subr.mxu0 0.0
    %410 = vmatpush1.msra.mxu0 0.0
    %411 = vmatprep.subr.mxu0 0.0
    %412 = vmatpush1.msra.mxu0 0.0
    %413 = vmatprep.subr.mxu0 0.0
    %414 = vmatpush1.msra.mxu0 0.0
    %415 = vmatprep.subr.mxu0 0.0
    %416 = vmatpush1.msra.mxu0 0.0
    %417 = vmatprep.subr.mxu0 0.0
    %418 = vmatpush1.msra.mxu0 0.0
    %419 = vmatprep.subr.mxu0 0.0
    %420 = vmatpush1.msra.mxu0 0.0
    %421 = vmatprep.subr.mxu0 0.0
    %422 = vmatpush1.msra.mxu0 0.0
    %423 = vmatprep.subr.mxu0 0.0
    %424 = vmatpush1.msra.mxu0 0.0
    %425 = vmatprep.subr.mxu0 0.0
    %426 = vmatpush1.msra.mxu0 0.0
    %427 = vmatprep.subr.mxu0 0.0
    %428 = vmatpush1.msra.mxu0 0.0
    %429 = vmatprep.subr.mxu0 0.0
    %430 = vmatpush1.msra.mxu0 0.0
    %431 = vmatprep.subr.mxu0 0.0
    %432 = vmatpush1.msra.mxu0 0.0
    %433 = vmatprep.subr.mxu0 0.0
    %434 = vmatpush1.msra.mxu0 0.0
    %435 = vmatprep.subr.mxu0 0.0
    %436 = vmatpush1.msra.mxu0 0.0
    %437 = vmatprep.subr.mxu0 0.0
    %438 = vmatpush1.msra.mxu0 0.0
    %439 = vmatprep.subr.mxu0 0.0
    %440 = vmatpush1.msra.mxu0 0.0
    %441 = vmatprep.subr.mxu0 0.0
    %442 = vmatpush1.msra.mxu0 0.0
    %443 = vmatprep.subr.mxu0 0.0
    %444 = vmatpush1.msra.mxu0 0.0
    %445 = vmatprep.subr.mxu0 0.0
    %446 = vmatpush1.msra.mxu0 0.0
    %447 = vmatprep.subr.mxu0 0.0
    %448 = vmatpush1.msra.mxu0 0.0
    %449 = vmatprep.subr.mxu0 0.0
    %450 = vmatpush1.msra.mxu0 0.0
    %451 = vmatprep.subr.mxu0 0.0
    %452 = vmatpush1.msra.mxu0 0.0
    %453 = vmatprep.subr.mxu0 0.0
    %454 = vmatpush1.msra.mxu0 0.0
    %455 = vmatprep.subr.mxu0 0.0
    %456 = vmatpush1.msra.mxu0 0.0
    %457 = vmatprep.mubr.f32.mxu0 0.0
    %458 = vmatmul.mubr.f32.gmra.mrb[0].mxu0 %v391
    %v459 = vpop.f32.mrb[0].mxu0
    %v460 = vadd.f32 %v388, %v459
    %v461 = vpop.f32.mrb[0].mxu0
    %462 = vdwg.mxu0
    %v463 = vtanh.pop %v460
    %v464 = vrot.slane %v139, 4
    %v465 = vrot.slane %v140, 3
    %v466 = vsel %vm153, %v465, %v464
    %v469 = vsel %vm156, %v463, 0
    %471 = vmatprep.subr.mxu0 0.0
    %472 = vmatpush1.msra.mxu0 %v141
    %473 = vmatprep.subr.mxu0 0.0
    %474 = vmatpush1.msra.mxu0 %v142
    %475 = vmatprep.subr.mxu0 0.0
    %476 = vmatpush1.msra.mxu0 %v143
    %477 = vmatprep.subr.mxu0 0.0
    %478 = vmatpush1.msra.mxu0 %v144
    %479 = vmatprep.subr.mxu0 0.0
    %480 = vmatpush1.msra.mxu0 0.0
    %481 = vmatprep.subr.mxu0 0.0
    %482 = vmatpush1.msra.mxu0 0.0
    %483 = vmatprep.subr.mxu0 0.0
    %484 = vmatpush1.msra.mxu0 0.0
    %485 = vmatprep.subr.mxu0 0.0
    %486 = vmatpush1.msra.mxu0 0.0
    %487 = vmatprep.subr.mxu0 0.0
    %488 = vmatpush1.msra.mxu0 0.0
    %489 = vmatprep.subr.mxu0 0.0
    %490 = vmatpush1.msra.mxu0 0.0
    %491 = vmatprep.subr.mxu0 0.0
    %492 = vmatpush1.msra.mxu0 0.0
    %493 = vmatprep.subr.mxu0 0.0
    %494 = vmatpush1.msra.mxu0 0.0
    %495 = vmatprep.subr.mxu0 0.0
    %496 = vmatpush1.msra.mxu0 0.0
    %497 = vmatprep.subr.mxu0 0.0
    %498 = vmatpush1.msra.mxu0 0.0
    %499 = vmatprep.subr.mxu0 0.0
    %500 = vmatpush1.msra.mxu0 0.0
    %501 = vmatprep.subr.mxu0 0.0
    %502 = vmatpush1.msra.mxu0 0.0
    %503 = vmatprep.subr.mxu0 0.0
    %504 = vmatpush1.msra.mxu0 0.0
    %505 = vmatprep.subr.mxu0 0.0
    %506 = vmatpush1.msra.mxu0 0.0
    %507 = vmatprep.subr.mxu0 0.0
    %508 = vmatpush1.msra.mxu0 0.0
    %509 = vmatprep.subr.mxu0 0.0
    %510 = vmatpush1.msra.mxu0 0.0
    %511 = vmatprep.subr.mxu0 0.0
    %512 = vmatpush1.msra.mxu0 0.0
    %513 = vmatprep.subr.mxu0 0.0
    %514 = vmatpush1.msra.mxu0 0.0
    %515 = vmatprep.subr.mxu0 0.0
    %516 = vmatpush1.msra.mxu0 0.0
    %517 = vmatprep.subr.mxu0 0.0
    %518 = vmatpush1.msra.mxu0 0.0
    %519 = vmatprep.subr.mxu0 0.0
    %520 = vmatpush1.msra.mxu0 0.0
    %521 = vmatprep.subr.mxu0 0.0
    %522 = vmatpush1.msra.mxu0 0.0
    %523 = vmatprep.subr.mxu0 0.0
    %524 = vmatpush1.msra.mxu0 0.0
    %525 = vmatprep.subr.mxu0 0.0
    %526 = vmatpush1.msra.mxu0 0.0
    %527 = vmatprep.subr.mxu0 0.0
    %528 = vmatpush1.msra.mxu0 0.0
    %529 = vmatprep.subr.mxu0 0.0
    %530 = vmatpush1.msra.mxu0 0.0
    %531 = vmatprep.subr.mxu0 0.0
    %532 = vmatpush1.msra.mxu0 0.0
    %533 = vmatprep.subr.mxu0 0.0
    %534 = vmatpush1.msra.mxu0 0.0
    %535 = vmatprep.mubr.f32.mxu0 0.0
    %536 = vmatmul.mubr.f32.gmra.mrb[0].mxu0 %v469
    %v537 = vpop.f32.mrb[0].mxu0
    %v538 = vadd.f32 %v466, %v537
    %v539 = vpop.f32.mrb[0].mxu0
    %540 = vdwg.mxu0
    %v541 = vtanh.pop %v538
    %v543 = vlaneseq
    %v544 = vshrl.u32 %v543, 7
    %v545 = vsub.s32 0, %v544
    %v546 = vrot.slane %v149, %v545
    %v549 = vsel %vm156, %v541, 0
    %551 = vmatprep.subr.mxu0 0.0
    %552 = vmatpush1.msra.mxu0 %v145
    %553 = vmatprep.subr.mxu0 0.0
    %554 = vmatpush1.msra.mxu0 %v146
    %555 = vmatprep.subr.mxu0 0.0
    %556 = vmatpush1.msra.mxu0 %v147
    %557 = vmatprep.subr.mxu0 0.0
    %558 = vmatpush1.msra.mxu0 %v148
    %559 = vmatprep.subr.mxu0 0.0
    %560 = vmatpush1.msra.mxu0 0.0
    %561 = vmatprep.subr.mxu0 0.0
    %562 = vmatpush1.msra.mxu0 0.0
    %563 = vmatprep.subr.mxu0 0.0
    %564 = vmatpush1.msra.mxu0 0.0
    %565 = vmatprep.subr.mxu0 0.0
    %566 = vmatpush1.msra.mxu0 0.0
    %567 = vmatprep.subr.mxu0 0.0
    %568 = vmatpush1.msra.mxu0 0.0
    %569 = vmatprep.subr.mxu0 0.0
    %570 = vmatpush1.msra.mxu0 0.0
    %571 = vmatprep.subr.mxu0 0.0
    %572 = vmatpush1.msra.mxu0 0.0
    %573 = vmatprep.subr.mxu0 0.0
    %574 = vmatpush1.msra.mxu0 0.0
    %575 = vmatprep.subr.mxu0 0.0
    %576 = vmatpush1.msra.mxu0 0.0
    %577 = vmatprep.subr.mxu0 0.0
    %578 = vmatpush1.msra.mxu0 0.0
    %579 = vmatprep.subr.mxu0 0.0
    %580 = vmatpush1.msra.mxu0 0.0
    %581 = vmatprep.subr.mxu0 0.0
    %582 = vmatpush1.msra.mxu0 0.0
    %583 = vmatprep.subr.mxu0 0.0
    %584 = vmatpush1.msra.mxu0 0.0
    %585 = vmatprep.subr.mxu0 0.0
    %586 = vmatpush1.msra.mxu0 0.0
    %587 = vmatprep.subr.mxu0 0.0
    %588 = vmatpush1.msra.mxu0 0.0
    %589 = vmatprep.subr.mxu0 0.0
    %590 = vmatpush1.msra.mxu0 0.0
    %591 = vmatprep.subr.mxu0 0.0
    %592 = vmatpush1.msra.mxu0 0.0
    %593 = vmatprep.subr.mxu0 0.0
    %594 = vmatpush1.msra.mxu0 0.0
    %595 = vmatprep.subr.mxu0 0.0
    %596 = vmatpush1.msra.mxu0 0.0
    %597 = vmatprep.subr.mxu0 0.0
    %598 = vmatpush1.msra.mxu0 0.0
    %599 = vmatprep.subr.mxu0 0.0
    %600 = vmatpush1.msra.mxu0 0.0
    %601 = vmatprep.subr.mxu0 0.0
    %602 = vmatpush1.msra.mxu0 0.0
    %603 = vmatprep.subr.mxu0 0.0
    %604 = vmatpush1.msra.mxu0 0.0
    %605 = vmatprep.subr.mxu0 0.0
    %606 = vmatpush1.msra.mxu0 0.0
    %607 = vmatprep.subr.mxu0 0.0
    %608 = vmatpush1.msra.mxu0 0.0
    %609 = vmatprep.subr.mxu0 0.0
    %610 = vmatpush1.msra.mxu0 0.0
    %611 = vmatprep.subr.mxu0 0.0
    %612 = vmatpush1.msra.mxu0 0.0
    %613 = vmatprep.subr.mxu0 0.0
    %614 = vmatpush1.msra.mxu0 0.0
    %615 = vmatprep.mubr.f32.mxu0 0.0
    %616 = vmatmul.mubr.f32.gmra.mrb[0].mxu0 %v549
    %v617 = vpop.f32.mrb[0].mxu0
    %v618 = vadd.f32 %v546, %v617
    %v619 = vpop.f32.mrb[0].mxu0
    %620 = vdwg.mxu0
    %v621 = vrot.slane %v139, 5
    %v622 = vrot.slane %v140, 4
    %v623 = vsel %vm153, %v622, %v621
    %625 = vmatprep.subr.mxu0 0.0
    %626 = vmatpush1.msra.mxu0 %v141
    %627 = vmatprep.subr.mxu0 0.0
    %628 = vmatpush1.msra.mxu0 %v142
    %629 = vmatprep.subr.mxu0 0.0
    %630 = vmatpush1.msra.mxu0 %v143
    %631 = vmatprep.subr.mxu0 0.0
    %632 = vmatpush1.msra.mxu0 %v144
    %633 = vmatprep.subr.mxu0 0.0
    %634 = vmatpush1.msra.mxu0 0.0
    %635 = vmatprep.subr.mxu0 0.0
    %636 = vmatpush1.msra.mxu0 0.0
    %637 = vmatprep.subr.mxu0 0.0
    %638 = vmatpush1.msra.mxu0 0.0
    %639 = vmatprep.subr.mxu0 0.0
    %640 = vmatpush1.msra.mxu0 0.0
    %641 = vmatprep.subr.mxu0 0.0
    %642 = vmatpush1.msra.mxu0 0.0
    %643 = vmatprep.subr.mxu0 0.0
    %644 = vmatpush1.msra.mxu0 0.0
    %645 = vmatprep.subr.mxu0 0.0
    %646 = vmatpush1.msra.mxu0 0.0
    %647 = vmatprep.subr.mxu0 0.0
    %648 = vmatpush1.msra.mxu0 0.0
    %649 = vmatprep.subr.mxu0 0.0
    %650 = vmatpush1.msra.mxu0 0.0
    %651 = vmatprep.subr.mxu0 0.0
    %652 = vmatpush1.msra.mxu0 0.0
    %653 = vmatprep.subr.mxu0 0.0
    %654 = vmatpush1.msra.mxu0 0.0
    %655 = vmatprep.subr.mxu0 0.0
    %656 = vmatpush1.msra.mxu0 0.0
    %657 = vmatprep.subr.mxu0 0.0
    %658 = vmatpush1.msra.mxu0 0.0
    %659 = vmatprep.subr.mxu0 0.0
    %660 = vmatpush1.msra.mxu0 0.0
    %661 = vmatprep.subr.mxu0 0.0
    %662 = vmatpush1.msra.mxu0 0.0
    %663 = vmatprep.subr.mxu0 0.0
    %664 = vmatpush1.msra.mxu0 0.0
    %665 = vmatprep.subr.mxu0 0.0
    %666 = vmatpush1.msra.mxu0 0.0
    %667 = vmatprep.subr.mxu0 0.0
    %668 = vmatpush1.msra.mxu0 0.0
    %669 = vmatprep.subr.mxu0 0.0
    %670 = vmatpush1.msra.mxu0 0.0
    %671 = vmatprep.subr.mxu0 0.0
    %672 = vmatpush1.msra.mxu0 0.0
    %673 = vmatprep.subr.mxu0 0.0
    %674 = vmatpush1.msra.mxu0 0.0
    %675 = vmatprep.subr.mxu0 0.0
    %676 = vmatpush1.msra.mxu0 0.0
    %677 = vmatprep.subr.mxu0 0.0
    %678 = vmatpush1.msra.mxu0 0.0
    %679 = vmatprep.subr.mxu0 0.0
    %680 = vmatpush1.msra.mxu0 0.0
    %681 = vmatprep.subr.mxu0 0.0
    %682 = vmatpush1.msra.mxu0 0.0
    %683 = vmatprep.subr.mxu0 0.0
    %684 = vmatpush1.msra.mxu0 0.0
    %685 = vmatprep.subr.mxu0 0.0
    %686 = vmatpush1.msra.mxu0 0.0
    %687 = vmatprep.subr.mxu0 0.0
    %688 = vmatpush1.msra.mxu0 0.0
    %689 = vmatprep.mubr.f32.mxu0 0.0
    %690 = vmatmul.mubr.f32.gmra.mrb[0].mxu0 %v549
    %v691 = vpop.f32.mrb[0].mxu0
    %v692 = vadd.f32 %v623, %v691
    %v693 = vpop.f32.mrb[0].mxu0
    %694 = vdwg.mxu0
    %v695 = vtanh.pop %v692
    %v697 = vsel %vm156, %v695, 0
    %699 = vmatprep.subr.mxu0 0.0
    %700 = vmatpush1.msra.mxu0 %v145
    %701 = vmatprep.subr.mxu0 0.0
    %702 = vmatpush1.msra.mxu0 %v146
    %703 = vmatprep.subr.mxu0 0.0
    %704 = vmatpush1.msra.mxu0 %v147
    %705 = vmatprep.subr.mxu0 0.0
    %706 = vmatpush1.msra.mxu0 %v148
    %707 = vmatprep.subr.mxu0 0.0
    %708 = vmatpush1.msra.mxu0 0.0
    %709 = vmatprep.subr.mxu0 0.0
    %710 = vmatpush1.msra.mxu0 0.0
    %711 = vmatprep.subr.mxu0 0.0
    %712 = vmatpush1.msra.mxu0 0.0
    %713 = vmatprep.subr.mxu0 0.0
    %714 = vmatpush1.msra.mxu0 0.0
    %715 = vmatprep.subr.mxu0 0.0
    %716 = vmatpush1.msra.mxu0 0.0
    %717 = vmatprep.subr.mxu0 0.0
    %718 = vmatpush1.msra.mxu0 0.0
    %719 = vmatprep.subr.mxu0 0.0
    %720 = vmatpush1.msra.mxu0 0.0
    %721 = vmatprep.subr.mxu0 0.0
    %722 = vmatpush1.msra.mxu0 0.0
    %723 = vmatprep.subr.mxu0 0.0
    %724 = vmatpush1.msra.mxu0 0.0
    %725 = vmatprep.subr.mxu0 0.0
    %726 = vmatpush1.msra.mxu0 0.0
    %727 = vmatprep.subr.mxu0 0.0
    %728 = vmatpush1.msra.mxu0 0.0
    %729 = vmatprep.subr.mxu0 0.0
    %730 = vmatpush1.msra.mxu0 0.0
    %731 = vmatprep.subr.mxu0 0.0
    %732 = vmatpush1.msra.mxu0 0.0
    %733 = vmatprep.subr.mxu0 0.0
    %734 = vmatpush1.msra.mxu0 0.0
    %735 = vmatprep.subr.mxu0 0.0
    %736 = vmatpush1.msra.mxu0 0.0
    %737 = vmatprep.subr.mxu0 0.0
    %738 = vmatpush1.msra.mxu0 0.0
    %739 = vmatprep.subr.mxu0 0.0
    %740 = vmatpush1.msra.mxu0 0.0
    %741 = vmatprep.subr.mxu0 0.0
    %742 = vmatpush1.msra.mxu0 0.0
    %743 = vmatprep.subr.mxu0 0.0
    %744 = vmatpush1.msra.mxu0 0.0
    %745 = vmatprep.subr.mxu0 0.0
    %746 = vmatpush1.msra.mxu0 0.0
    %747 = vmatprep.subr.mxu0 0.0
    %748 = vmatpush1.msra.mxu0 0.0
    %749 = vmatprep.subr.mxu0 0.0
    %750 = vmatpush1.msra.mxu0 0.0
    %751 = vmatprep.subr.mxu0 0.0
    %752 = vmatpush1.msra.mxu0 0.0
    %753 = vmatprep.subr.mxu0 0.0
    %754 = vmatpush1.msra.mxu0 0.0
    %755 = vmatprep.subr.mxu0 0.0
    %756 = vmatpush1.msra.mxu0 0.0
    %757 = vmatprep.subr.mxu0 0.0
    %758 = vmatpush1.msra.mxu0 0.0
    %759 = vmatprep.subr.mxu0 0.0
    %760 = vmatpush1.msra.mxu0 0.0
    %761 = vmatprep.subr.mxu0 0.0
    %762 = vmatpush1.msra.mxu0 0.0
    %763 = vmatprep.mubr.f32.mxu0 0.0
    %764 = vmatmul.mubr.f32.gmra.mrb[0].mxu0 %v697
    %v765 = vpop.f32.mrb[0].mxu0
    %v766 = vadd.f32 %v546, %v765
    %v767 = vpop.f32.mrb[0].mxu0
    %768 = vdwg.mxu0
    %v769 = vrot.slane %v139, 6
    %v770 = vrot.slane %v140, 5
    %v771 = vsel %vm153, %v770, %v769
    %773 = vmatprep.subr.mxu0 0.0
    %774 = vmatpush1.msra.mxu0 %v141
    %775 = vmatprep.subr.mxu0 0.0
    %776 = vmatpush1.msra.mxu0 %v142
    %777 = vmatprep.subr.mxu0 0.0
    %778 = vmatpush1.msra.mxu0 %v143
    %779 = vmatprep.subr.mxu0 0.0
    %780 = vmatpush1.msra.mxu0 %v144
    %781 = vmatprep.subr.mxu0 0.0
    %782 = vmatpush1.msra.mxu0 0.0
    %783 = vmatprep.subr.mxu0 0.0
    %784 = vmatpush1.msra.mxu0 0.0
    %785 = vmatprep.subr.mxu0 0.0
    %786 = vmatpush1.msra.mxu0 0.0
    %787 = vmatprep.subr.mxu0 0.0
    %788 = vmatpush1.msra.mxu0 0.0
    %789 = vmatprep.subr.mxu0 0.0
    %790 = vmatpush1.msra.mxu0 0.0
    %791 = vmatprep.subr.mxu0 0.0
    %792 = vmatpush1.msra.mxu0 0.0
    %793 = vmatprep.subr.mxu0 0.0
    %794 = vmatpush1.msra.mxu0 0.0
    %795 = vmatprep.subr.mxu0 0.0
    %796 = vmatpush1.msra.mxu0 0.0
    %797 = vmatprep.subr.mxu0 0.0
    %798 = vmatpush1.msra.mxu0 0.0
    %799 = vmatprep.subr.mxu0 0.0
    %800 = vmatpush1.msra.mxu0 0.0
    %801 = vmatprep.subr.mxu0 0.0
    %802 = vmatpush1.msra.mxu0 0.0
    %803 = vmatprep.subr.mxu0 0.0
    %804 = vmatpush1.msra.mxu0 0.0
    %805 = vmatprep.subr.mxu0 0.0
    %806 = vmatpush1.msra.mxu0 0.0
    %807 = vmatprep.subr.mxu0 0.0
    %808 = vmatpush1.msra.mxu0 0.0
    %809 = vmatprep.subr.mxu0 0.0
    %810 = vmatpush1.msra.mxu0 0.0
    %811 = vmatprep.subr.mxu0 0.0
    %812 = vmatpush1.msra.mxu0 0.0
    %813 = vmatprep.subr.mxu0 0.0
    %814 = vmatpush1.msra.mxu0 0.0
    %815 = vmatprep.subr.mxu0 0.0
    %816 = vmatpush1.msra.mxu0 0.0
    %817 = vmatprep.subr.mxu0 0.0
    %818 = vmatpush1.msra.mxu0 0.0
    %819 = vmatprep.subr.mxu0 0.0
    %820 = vmatpush1.msra.mxu0 0.0
    %821 = vmatprep.subr.mxu0 0.0
    %822 = vmatpush1.msra.mxu0 0.0
    %823 = vmatprep.subr.mxu0 0.0
    %824 = vmatpush1.msra.mxu0 0.0
    %825 = vmatprep.subr.mxu0 0.0
    %826 = vmatpush1.msra.mxu0 0.0
    %827 = vmatprep.subr.mxu0 0.0
    %828 = vmatpush1.msra.mxu0 0.0
    %829 = vmatprep.subr.mxu0 0.0
    %830 = vmatpush1.msra.mxu0 0.0
    %831 = vmatprep.subr.mxu0 0.0
    %832 = vmatpush1.msra.mxu0 0.0
    %833 = vmatprep.subr.mxu0 0.0
    %834 = vmatpush1.msra.mxu0 0.0
    %835 = vmatprep.subr.mxu0 0.0
    %836 = vmatpush1.msra.mxu0 0.0
    %837 = vmatprep.mubr.f32.mxu0 0.0
    %838 = vmatmul.mubr.f32.gmra.mrb[0].mxu0 %v697
    %v839 = vpop.f32.mrb[0].mxu0
    %v840 = vadd.f32 %v771, %v839
    %v841 = vpop.f32.mrb[0].mxu0
    %842 = vdwg.mxu0
    %v843 = vtanh.pop %v840
    %v845 = vsel %vm156, %v843, 0
    %847 = vmatprep.subr.mxu0 0.0
    %848 = vmatpush1.msra.mxu0 %v145
    %849 = vmatprep.subr.mxu0 0.0
    %850 = vmatpush1.msra.mxu0 %v146
    %851 = vmatprep.subr.mxu0 0.0
    %852 = vmatpush1.msra.mxu0 %v147
    %853 = vmatprep.subr.mxu0 0.0
    %854 = vmatpush1.msra.mxu0 %v148
    %855 = vmatprep.subr.mxu0 0.0
    %856 = vmatpush1.msra.mxu0 0.0
    %857 = vmatprep.subr.mxu0 0.0
    %858 = vmatpush1.msra.mxu0 0.0
    %859 = vmatprep.subr.mxu0 0.0
    %860 = vmatpush1.msra.mxu0 0.0
    %861 = vmatprep.subr.mxu0 0.0
    %862 = vmatpush1.msra.mxu0 0.0
    %863 = vmatprep.subr.mxu0 0.0
    %864 = vmatpush1.msra.mxu0 0.0
    %865 = vmatprep.subr.mxu0 0.0
    %866 = vmatpush1.msra.mxu0 0.0
    %867 = vmatprep.subr.mxu0 0.0
    %868 = vmatpush1.msra.mxu0 0.0
    %869 = vmatprep.subr.mxu0 0.0
    %870 = vmatpush1.msra.mxu0 0.0
    %871 = vmatprep.subr.mxu0 0.0
    %872 = vmatpush1.msra.mxu0 0.0
    %873 = vmatprep.subr.mxu0 0.0
    %874 = vmatpush1.msra.mxu0 0.0
    %875 = vmatprep.subr.mxu0 0.0
    %876 = vmatpush1.msra.mxu0 0.0
    %877 = vmatprep.subr.mxu0 0.0
    %878 = vmatpush1.msra.mxu0 0.0
    %879 = vmatprep.subr.mxu0 0.0
    %880 = vmatpush1.msra.mxu0 0.0
    %881 = vmatprep.subr.mxu0 0.0
    %882 = vmatpush1.msra.mxu0 0.0
    %883 = vmatprep.subr.mxu0 0.0
    %884 = vmatpush1.msra.mxu0 0.0
    %885 = vmatprep.subr.mxu0 0.0
    %886 = vmatpush1.msra.mxu0 0.0
    %887 = vmatprep.subr.mxu0 0.0
    %888 = vmatpush1.msra.mxu0 0.0
    %889 = vmatprep.subr.mxu0 0.0
    %890 = vmatpush1.msra.mxu0 0.0
    %891 = vmatprep.subr.mxu0 0.0
    %892 = vmatpush1.msra.mxu0 0.0
    %893 = vmatprep.subr.mxu0 0.0
    %894 = vmatpush1.msra.mxu0 0.0
    %895 = vmatprep.subr.mxu0 0.0
    %896 = vmatpush1.msra.mxu0 0.0
    %897 = vmatprep.subr.mxu0 0.0
    %898 = vmatpush1.msra.mxu0 0.0
    %899 = vmatprep.subr.mxu0 0.0
    %900 = vmatpush1.msra.mxu0 0.0
    %901 = vmatprep.subr.mxu0 0.0
    %902 = vmatpush1.msra.mxu0 0.0
    %903 = vmatprep.subr.mxu0 0.0
    %904 = vmatpush1.msra.mxu0 0.0
    %905 = vmatprep.subr.mxu0 0.0
    %906 = vmatpush1.msra.mxu0 0.0
    %907 = vmatprep.subr.mxu0 0.0
    %908 = vmatpush1.msra.mxu0 0.0
    %909 = vmatprep.subr.mxu0 0.0
    %910 = vmatpush1.msra.mxu0 0.0
    %911 = vmatprep.mubr.f32.mxu0 0.0
    %912 = vmatmul.mubr.f32.gmra.mrb[0].mxu0 %v845
    %v913 = vpop.f32.mrb[0].mxu0
    %v914 = vadd.f32 %v546, %v913
    %v915 = vpop.f32.mrb[0].mxu0
    %916 = vdwg.mxu0
    %v917 = vrot.slane %v139, 7
    %v918 = vrot.slane %v140, 6
    %v919 = vsel %vm153, %v918, %v917
    %921 = vmatprep.subr.mxu0 0.0
    %922 = vmatpush1.msra.mxu0 %v141
    %923 = vmatprep.subr.mxu0 0.0
    %924 = vmatpush1.msra.mxu0 %v142
    %925 = vmatprep.subr.mxu0 0.0
    %926 = vmatpush1.msra.mxu0 %v143
    %927 = vmatprep.subr.mxu0 0.0
    %928 = vmatpush1.msra.mxu0 %v144
    %929 = vmatprep.subr.mxu0 0.0
    %930 = vmatpush1.msra.mxu0 0.0
    %931 = vmatprep.subr.mxu0 0.0
    %932 = vmatpush1.msra.mxu0 0.0
    %933 = vmatprep.subr.mxu0 0.0
    %934 = vmatpush1.msra.mxu0 0.0
    %935 = vmatprep.subr.mxu0 0.0
    %936 = vmatpush1.msra.mxu0 0.0
    %937 = vmatprep.subr.mxu0 0.0
    %938 = vmatpush1.msra.mxu0 0.0
    %939 = vmatprep.subr.mxu0 0.0
    %940 = vmatpush1.msra.mxu0 0.0
    %941 = vmatprep.subr.mxu0 0.0
    %942 = vmatpush1.msra.mxu0 0.0
    %943 = vmatprep.subr.mxu0 0.0
    %944 = vmatpush1.msra.mxu0 0.0
    %945 = vmatprep.subr.mxu0 0.0
    %946 = vmatpush1.msra.mxu0 0.0
    %947 = vmatprep.subr.mxu0 0.0
    %948 = vmatpush1.msra.mxu0 0.0
    %949 = vmatprep.subr.mxu0 0.0
    %950 = vmatpush1.msra.mxu0 0.0
    %951 = vmatprep.subr.mxu0 0.0
    %952 = vmatpush1.msra.mxu0 0.0
    %953 = vmatprep.subr.mxu0 0.0
    %954 = vmatpush1.msra.mxu0 0.0
    %955 = vmatprep.subr.mxu0 0.0
    %956 = vmatpush1.msra.mxu0 0.0
    %957 = vmatprep.subr.mxu0 0.0
    %958 = vmatpush1.msra.mxu0 0.0
    %959 = vmatprep.subr.mxu0 0.0
    %960 = vmatpush1.msra.mxu0 0.0
    %961 = vmatprep.subr.mxu0 0.0
    %962 = vmatpush1.msra.mxu0 0.0
    %963 = vmatprep.subr.mxu0 0.0
    %964 = vmatpush1.msra.mxu0 0.0
    %965 = vmatprep.subr.mxu0 0.0
    %966 = vmatpush1.msra.mxu0 0.0
    %967 = vmatprep.subr.mxu0 0.0
    %968 = vmatpush1.msra.mxu0 0.0
    %969 = vmatprep.subr.mxu0 0.0
    %970 = vmatpush1.msra.mxu0 0.0
    %971 = vmatprep.subr.mxu0 0.0
    %972 = vmatpush1.msra.mxu0 0.0
    %973 = vmatprep.subr.mxu0 0.0
    %974 = vmatpush1.msra.mxu0 0.0
    %975 = vmatprep.subr.mxu0 0.0
    %976 = vmatpush1.msra.mxu0 0.0
    %977 = vmatprep.subr.mxu0 0.0
    %978 = vmatpush1.msra.mxu0 0.0
    %979 = vmatprep.subr.mxu0 0.0
    %980 = vmatpush1.msra.mxu0 0.0
    %981 = vmatprep.subr.mxu0 0.0
    %982 = vmatpush1.msra.mxu0 0.0
    %983 = vmatprep.subr.mxu0 0.0
    %984 = vmatpush1.msra.mxu0 0.0
    %985 = vmatprep.mubr.f32.mxu0 0.0
    %986 = vmatmul.mubr.f32.gmra.mrb[0].mxu0 %v845
    %v987 = vpop.f32.mrb[0].mxu0
    %v988 = vadd.f32 %v919, %v987
    %v989 = vpop.f32.mrb[0].mxu0
    %990 = vdwg.mxu0
    %v991 = vtanh.pop %v988
    %v993 = vsel %vm156, %v991, 0
    %995 = vmatprep.subr.mxu0 0.0
    %996 = vmatpush1.msra.mxu0 %v145
    %997 = vmatprep.subr.mxu0 0.0
    %998 = vmatpush1.msra.mxu0 %v146
    %999 = vmatprep.subr.mxu0 0.0
    %1000 = vmatpush1.msra.mxu0 %v147
    %1001 = vmatprep.subr.mxu0 0.0
    %1002 = vmatpush1.msra.mxu0 %v148
    %1003 = vmatprep.subr.mxu0 0.0
    %1004 = vmatpush1.msra.mxu0 0.0
    %1005 = vmatprep.subr.mxu0 0.0
    %1006 = vmatpush1.msra.mxu0 0.0
    %1007 = vmatprep.subr.mxu0 0.0
    %1008 = vmatpush1.msra.mxu0 0.0
    %1009 = vmatprep.subr.mxu0 0.0
    %1010 = vmatpush1.msra.mxu0 0.0
    %1011 = vmatprep.subr.mxu0 0.0
    %1012 = vmatpush1.msra.mxu0 0.0
    %1013 = vmatprep.subr.mxu0 0.0
    %1014 = vmatpush1.msra.mxu0 0.0
    %1015 = vmatprep.subr.mxu0 0.0
    %1016 = vmatpush1.msra.mxu0 0.0
    %1017 = vmatprep.subr.mxu0 0.0
    %1018 = vmatpush1.msra.mxu0 0.0
    %1019 = vmatprep.subr.mxu0 0.0
    %1020 = vmatpush1.msra.mxu0 0.0
    %1021 = vmatprep.subr.mxu0 0.0
    %1022 = vmatpush1.msra.mxu0 0.0
    %1023 = vmatprep.subr.mxu0 0.0
    %1024 = vmatpush1.msra.mxu0 0.0
    %1025 = vmatprep.subr.mxu0 0.0
    %1026 = vmatpush1.msra.mxu0 0.0
    %1027 = vmatprep.subr.mxu0 0.0
    %1028 = vmatpush1.msra.mxu0 0.0
    %1029 = vmatprep.subr.mxu0 0.0
    %1030 = vmatpush1.msra.mxu0 0.0
    %1031 = vmatprep.subr.mxu0 0.0
    %1032 = vmatpush1.msra.mxu0 0.0
    %1033 = vmatprep.subr.mxu0 0.0
    %1034 = vmatpush1.msra.mxu0 0.0
    %1035 = vmatprep.subr.mxu0 0.0
    %1036 = vmatpush1.msra.mxu0 0.0
    %1037 = vmatprep.subr.mxu0 0.0
    %1038 = vmatpush1.msra.mxu0 0.0
    %1039 = vmatprep.subr.mxu0 0.0
    %1040 = vmatpush1.msra.mxu0 0.0
    %1041 = vmatprep.subr.mxu0 0.0
    %1042 = vmatpush1.msra.mxu0 0.0
    %1043 = vmatprep.subr.mxu0 0.0
    %1044 = vmatpush1.msra.mxu0 0.0
    %1045 = vmatprep.subr.mxu0 0.0
    %1046 = vmatpush1.msra.mxu0 0.0
    %1047 = vmatprep.subr.mxu0 0.0
    %1048 = vmatpush1.msra.mxu0 0.0
    %1049 = vmatprep.subr.mxu0 0.0
    %1050 = vmatpush1.msra.mxu0 0.0
    %1051 = vmatprep.subr.mxu0 0.0
    %1052 = vmatpush1.msra.mxu0 0.0
    %1053 = vmatprep.subr.mxu0 0.0
    %1054 = vmatpush1.msra.mxu0 0.0
    %1055 = vmatprep.subr.mxu0 0.0
    %1056 = vmatpush1.msra.mxu0 0.0
    %1057 = vmatprep.subr.mxu0 0.0
    %1058 = vmatpush1.msra.mxu0 0.0
    %1059 = vmatprep.mubr.f32.mxu0 0.0
    %1060 = vmatmul.mubr.f32.gmra.mrb[0].mxu0 %v993
    %v1061 = vpop.f32.mrb[0].mxu0
    %v1062 = vadd.f32 %v546, %v1061
    %v1063 = vpop.f32.mrb[0].mxu0
    %1064 = vdwg.mxu0
    %1066 = vrot.lane.b32.xlu0 %v766, 4
    %v1067 = vpop.permute.xlu0 %1066
    %1070 = vrot.lane.b32.xlu0 %v914, 8
    %v1071 = vpop.permute.xlu0 %1070
    %1074 = vrot.lane.b32.xlu0 %v1062, 12
    %v1075 = vpop.permute.xlu0 %1074
    %vm1077 = vcmask 31744
    %v1078 = vsel %vm1077, %v618, %v1067
    %vm1079 = vcmask 64512
    %v1080 = vsel %vm1079, %v1078, %v1071
    %vm1081 = vcmask 97280
    %v1082 = vsel %vm1081, %v1080, %v1075
    %vm1083 = vcmask 123904
    %1084 = vst.msk [vmem:[#allocation7] sm:$0x3] %vm1083, %v1082
    // Predicated region
    $region34: #{tpu_custom_call.1} parent=1 // pred_check
      _
    $region35: #{tpu_custom_call.1} parent=1 // pred_check_branch
      %1086 = sbr.rel (0) target = $region37
    $region36: #{tpu_custom_call.1} parent=1 // pred_region
      %s1088 = ssub.s32 32, 32
      %1089 = vsyncadd [#allocation4], %s1088
      %s1091 = sshll.u32 [#allocation7], 4
      %s1092 = int_to_ptr.vmem [resolvable:$true] %s1091
      %1094 = dma.vmem_to_hbm [thread:$0]  %s1092, 32, %s6, [#allocation4]
    $region37: #{tpu_custom_call.1} parent=1 // pred_fallthru
      _
    // Predicated region
    $region38: #{tpu_custom_call.1} parent=1 // pred_check
      _
    $region39: #{tpu_custom_call.1} parent=1 // pred_check_branch
      %1096 = sbr.rel (0) target = $region41
    $region40: #{tpu_custom_call.1} parent=1 // pred_region
      %1097 = dma.done [#allocation4], 32
    $region41: #{tpu_custom_call.1} parent=1 // pred_fallthru
      _
    %1098 = vsyncpa [#allocation3], 1
    %1099 = vsyncpa [#allocation6], 1
    %1100 = vsyncpa [#allocation4], 1

</llo_original>
